<compile_context>
chip_gen: v7x
topology: tpu7x:2x2x1
jax: 0.10.0
libtpu: 0.0.40
codegen_flags: <defaults>
</compile_context>

<pallas_src>
import functools

import jax
import jax.numpy as jnp
from jax.experimental import pallas as pl
from jax.experimental.pallas import tpu as pltpu

EPS = 1e-5  # torch nn.LayerNorm default eps


def _layernorm(x, g, b):
    mu = jnp.mean(x, axis=-1, keepdims=True)
    var = jnp.mean((x - mu) ** 2, axis=-1, keepdims=True)
    return (x - mu) * jax.lax.rsqrt(var + EPS) * g + b


# --------------------------------------------------------------------------
# Kernel 1: LN1 + K/V projection, once per (batch, kv-tile).
# Output is head-major bf16 (B, H, N, hd) so the flash loop slices sublanes.
# --------------------------------------------------------------------------
def kv_proj_kernel(z_ref, ln1_g_ref, ln1_b_ref, wk_ref, bk_ref, wv_ref, bv_ref,
                   k_ref, v_ref, *, num_heads):
    x = z_ref[0].astype(jnp.float32)                       # (TKV, D)
    h = _layernorm(x, ln1_g_ref[...], ln1_b_ref[...]).astype(jnp.bfloat16)
    # Full-width projections (good MXU fill), then one static lane-slice per head.
    k = jnp.dot(h, wk_ref[...], preferred_element_type=jnp.float32) + bk_ref[...]
    v = jnp.dot(h, wv_ref[...], preferred_element_type=jnp.float32) + bv_ref[...]
    hd = k.shape[-1] // num_heads
    for hi in range(num_heads):
        hs = slice(hi * hd, (hi + 1) * hd)
        k_ref[0, hi] = k[:, hs].astype(k_ref.dtype)
        v_ref[0, hi] = v[:, hs].astype(v_ref.dtype)


# --------------------------------------------------------------------------
# Kernel 2: fused block. grid = (B, n_q_tiles, n_hidden_tiles).
# ht == 0          : LN1(zq), Q proj, flash attention over K/V, W_O, residual,
#                    LN2 -> scratch; zero MLP accumulator.
# every ht         : one hidden tile of the MLP (gelu(h2@w1_t + b1_t) @ w2_t).
# ht == last       : write z1 + mlp + b2.
# --------------------------------------------------------------------------
def vit_block_kernel(zq_ref, k_ref, v_ref,
                     ln1_g_ref, ln1_b_ref, wq_ref, bq_ref, wo_ref, bo_ref,
                     ln2_g_ref, ln2_b_ref, w1_ref, b1_ref, w2_ref, b2_ref,
                     o_ref,
                     attn_sc, z1_sc, h2_sc, acc_sc,
                     *, num_heads, k_tile, approximate_gelu):
    ht = pl.program_id(2)

    @pl.when(ht == 0)
    def _attention_and_ln2():
        zq = zq_ref[0].astype(jnp.float32)                 # (TQ, D) query/residual
        TQ, D = zq.shape
        hd = D // num_heads
        scale = 1.0 / (hd ** 0.5)
        n_kv = k_ref.shape[2]
        num_kt = n_kv // k_tile

        hq = _layernorm(zq, ln1_g_ref[...], ln1_b_ref[...]).astype(jnp.bfloat16)
        # One full-width Q projection (MXU-friendly); 1/sqrt(hd) folded in once.
        q = (jnp.dot(hq, wq_ref[...], preferred_element_type=jnp.float32)
             + bq_ref[...]) * scale                        # (TQ, D) f32

        # TODO(synk): no key mask for padded sequences (N must be a multiple of
        # the tiles); add a length-aware last K-tile if padding is expected.
        for hi in range(num_heads):                        # static: num_heads is small
            q_h = q[:, hi * hd:(hi + 1) * hd].astype(jnp.bfloat16)

            def body(kt, carry):
                m_i, l_i, acc = carry
                s0 = pl.multiple_of(kt * k_tile, k_tile)
                k_t = k_ref[0, hi, pl.ds(s0, k_tile), :]   # (TK, hd) bf16, sublane slice
                v_t = v_ref[0, hi, pl.ds(s0, k_tile), :]
                # contract last axes -> no explicit k_t.T (no XLU transpose)
                s = jax.lax.dot_general(q_h, k_t, (((1,), (1,)), ((), ())),
                                        preferred_element_type=jnp.float32)
                m_new = jnp.maximum(m_i, jnp.max(s, axis=-1, keepdims=True))
                alpha = jnp.exp(m_i - m_new)
                p = jnp.exp(s - m_new)
                l_new = alpha * l_i + jnp.sum(p, axis=-1, keepdims=True)
                acc_new = alpha * acc + jnp.dot(p.astype(jnp.bfloat16), v_t,
                                                preferred_element_type=jnp.float32)
                return m_new, l_new, acc_new

            m0 = jnp.full((TQ, 1), -jnp.inf, jnp.float32)
            l0 = jnp.zeros((TQ, 1), jnp.float32)
            a0 = jnp.zeros((TQ, hd), jnp.float32)
            _, l_i, acc = jax.lax.fori_loop(0, num_kt, body, (m0, l0, a0))
            # exact divide: once per head per q-tile, hidden under the MXU work.
            attn_sc[:, hi * hd:(hi + 1) * hd] = (acc / l_i).astype(attn_sc.dtype)

        # Single full-width output projection (K = D) instead of per-head K = hd.
        msa = jnp.dot(attn_sc[...], wo_ref[...],
                      preferred_element_type=jnp.float32) + bo_ref[...]
        z1 = zq + msa
        z1_sc[...] = z1
        h2_sc[...] = _layernorm(z1, ln2_g_ref[...], ln2_b_ref[...]).astype(h2_sc.dtype)
        acc_sc[...] = jnp.zeros_like(acc_sc)

    # MLP hidden tile (runs for every ht, weights streamed via BlockSpec).
    m = jnp.dot(h2_sc[...], w1_ref[...], preferred_element_type=jnp.float32) + b1_ref[...]
    m = jax.nn.gelu(m, approximate=approximate_gelu)
    acc_sc[...] = acc_sc[...] + jnp.dot(m.astype(jnp.bfloat16), w2_ref[...],
                                        preferred_element_type=jnp.float32)

    @pl.when(ht == pl.num_programs(2) - 1)
    def _writeback():
        o_ref[0] = (z1_sc[...] + acc_sc[...] + b2_ref[...]).astype(o_ref.dtype)


# --------------------------------------------------------------------------
# Wrapper
# --------------------------------------------------------------------------
def _vmem_capacity_bytes():
    try:
        return int(pltpu.get_tpu_info().vmem_capacity_bytes)
    except Exception:
        return 128 * 1024 * 1024


def _pick_tile(n, cap, align):
    """Largest divisor of n that is <= cap and a multiple of `align` (else n)."""
    if n <= cap:
        return n
    t = (cap // align) * align
    while t >= align:
        if n % t == 0:
            return t
        t -= align
    return n


def vit_encoder_block(z, params, *, num_heads,
                      q_tile=None, k_tile=None, kv_tile=None, h_tile=None,
                      approximate_gelu=False, vmem_limit_bytes=None):
    """Fused ViT encoder block. grid = (B, N // q_tile, hidden // h_tile)."""
    B, N, D = z.shape
    assert D % num_heads == 0, "emb_dim must be divisible by head count"
    hd = D // num_heads
    hidden = int(params["w1"].shape[-1])

    vmem_cap = _vmem_capacity_bytes()
    if vmem_limit_bytes is None:
        vmem_limit_bytes = min(int(vmem_cap * 3 // 4), 96 * 1024 * 1024)
    big_vmem = vmem_cap >= 100 * 1024 * 1024            # v5e/v6e: 128 MiB, v7x: 64 MiB

    if q_tile is None:
        q_tile = _pick_tile(N, 512 if big_vmem else 256, 8)
    if k_tile is None:
        k_tile = _pick_tile(N, 256, 8)
    if kv_tile is None:
        kv_tile = _pick_tile(N, 256, 8)
    if h_tile is None:
        h_tile = _pick_tile(hidden, 1024, 128)

    assert N % q_tile == 0 and (q_tile == N or q_tile % 8 == 0)
    assert N % k_tile == 0
    assert N % kv_tile == 0 and (kv_tile == N or kv_tile % 8 == 0)
    assert hidden % h_tile == 0 and (h_tile == hidden or h_tile % 128 == 0)

    f32, bf16 = jnp.float32, jnp.bfloat16
    ln1_g = params["ln1_g"].astype(f32); ln1_b = params["ln1_b"].astype(f32)
    ln2_g = params["ln2_g"].astype(f32); ln2_b = params["ln2_b"].astype(f32)
    wq = params["wq"].astype(bf16); bq = params["bq"].astype(f32)
    wk = params["wk"].astype(bf16); bk = params["bk"].astype(f32)
    wv = params["wv"].astype(bf16); bv = params["bv"].astype(f32)
    wo = params["wo"].astype(bf16); bo = params["bo"].astype(f32)
    w1 = params["w1"].astype(bf16); b1 = params["b1"].astype(f32)
    w2 = params["w2"].astype(bf16); b2 = params["b2"].astype(f32)

    # ---- pass 1: LN1 + K/V projection, once per batch (head-major bf16) ----
    kv_grid = (B, N // kv_tile)
    k_hm, v_hm = pl.pallas_call(
        functools.partial(kv_proj_kernel, num_heads=num_heads),
        out_shape=(jax.ShapeDtypeStruct((B, num_heads, N, hd), bf16),
                   jax.ShapeDtypeStruct((B, num_heads, N, hd), bf16)),
        grid_spec=pltpu.PrefetchScalarGridSpec(
            num_scalar_prefetch=0, grid=kv_grid,
            in_specs=[
                pl.BlockSpec((1, kv_tile, D), lambda b, t: (b, t, 0)),
                pl.BlockSpec((1, D), lambda b, t: (0, 0)),
                pl.BlockSpec((1, D), lambda b, t: (0, 0)),
                pl.BlockSpec((D, D), lambda b, t: (0, 0)),
                pl.BlockSpec((1, D), lambda b, t: (0, 0)),
                pl.BlockSpec((D, D), lambda b, t: (0, 0)),
                pl.BlockSpec((1, D), lambda b, t: (0, 0)),
            ],
            out_specs=(pl.BlockSpec((1, num_heads, kv_tile, hd), lambda b, t: (b, 0, t, 0)),
                       pl.BlockSpec((1, num_heads, kv_tile, hd), lambda b, t: (b, 0, t, 0))),
        ),
        compiler_params=pltpu.CompilerParams(
            dimension_semantics=("parallel", "parallel"),
            vmem_limit_bytes=vmem_limit_bytes),
    )(z, ln1_g, ln1_b, wk, bk, wv, bv)

    # ---- pass 2: fused attention + MLP ----
    n_qt = N // q_tile
    n_ht = hidden // h_tile
    grid = (B, n_qt, n_ht)

    in_specs = [
        pl.BlockSpec((1, q_tile, D), lambda b, qi, ht: (b, qi, 0)),          # z (query/residual)
        pl.BlockSpec((1, num_heads, N, hd), lambda b, qi, ht: (b, 0, 0, 0)), # K
        pl.BlockSpec((1, num_heads, N, hd), lambda b, qi, ht: (b, 0, 0, 0)), # V
        pl.BlockSpec((1, D), lambda b, qi, ht: (0, 0)),                      # ln1_g
        pl.BlockSpec((1, D), lambda b, qi, ht: (0, 0)),                      # ln1_b
        pl.BlockSpec((D, D), lambda b, qi, ht: (0, 0)),                      # wq
        pl.BlockSpec((1, D), lambda b, qi, ht: (0, 0)),                      # bq
        pl.BlockSpec((D, D), lambda b, qi, ht: (0, 0)),                      # wo
        pl.BlockSpec((1, D), lambda b, qi, ht: (0, 0)),                      # bo
        pl.BlockSpec((1, D), lambda b, qi, ht: (0, 0)),                      # ln2_g
        pl.BlockSpec((1, D), lambda b, qi, ht: (0, 0)),                      # ln2_b
        pl.BlockSpec((D, h_tile), lambda b, qi, ht: (0, ht)),                # w1 tile
        pl.BlockSpec((1, h_tile), lambda b, qi, ht: (0, ht)),                # b1 tile
        pl.BlockSpec((h_tile, D), lambda b, qi, ht: (ht, 0)),                # w2 tile
        pl.BlockSpec((1, D), lambda b, qi, ht: (0, 0)),                      # b2
    ]
    out_spec = pl.BlockSpec((1, q_tile, D), lambda b, qi, ht: (b, qi, 0))
    scratch = [
        pltpu.VMEM((q_tile, D), bf16),   # per-head attention outputs (pre-W_O)
        pltpu.VMEM((q_tile, D), f32),    # z1 residual
        pltpu.VMEM((q_tile, D), bf16),   # LN2(z1), MXU-ready
        pltpu.VMEM((q_tile, D), f32),    # MLP accumulator
    ]

    # Advisory cost estimate (weights counted once; MLP weights re-streamed when tiled).
    flops = int(B * (4 * N * D * D + 4 * N * N * D + 4 * N * D * hidden))
    transcendentals = int(B * (num_heads * N * N + N * hidden))
    mlp_w_bytes = int((w1.size + w2.size) * 2)
    other_param_bytes = int(sum(int(a.size) * a.dtype.itemsize for a in
                                (ln1_g, ln1_b, wq, bq, wo, bo, ln2_g, ln2_b, b1, b2)))
    act_bytes = int(2 * B * N * D * z.dtype.itemsize + 2 * B * N * D * 2)  # z in/out + K/V bf16
    bytes_accessed = int(act_bytes + other_param_bytes
                         + mlp_w_bytes * (B * n_qt if n_ht > 1 else 1))

    return pl.pallas_call(
        functools.partial(vit_block_kernel, num_heads=num_heads, k_tile=k_tile,
                          approximate_gelu=approximate_gelu),
        out_shape=jax.ShapeDtypeStruct((B, N, D), z.dtype),
        grid_spec=pltpu.PrefetchScalarGridSpec(
            num_scalar_prefetch=0, grid=grid,
            in_specs=in_specs, out_specs=out_spec, scratch_shapes=scratch),
        compiler_params=pltpu.CompilerParams(
            dimension_semantics=("parallel", "parallel", "arbitrary"),
            vmem_limit_bytes=vmem_limit_bytes),
        cost_estimate=pl.CostEstimate(flops=flops, transcendentals=transcendentals,
                                      bytes_accessed=bytes_accessed),
    )(z, k_hm, v_hm, ln1_g, ln1_b, wq, bq, wo, bo, ln2_g, ln2_b, w1, b1, w2, b2)


# ---------------- pure-JAX reference (mirrors the torch module) ----------------
def _reference(z, params, num_heads):
    z = z.astype(jnp.float32)
    B, N, D = z.shape
    hd = D // num_heads

    def ln(x, g, b):
        mu = jnp.mean(x, -1, keepdims=True)
        var = jnp.mean((x - mu) ** 2, -1, keepdims=True)
        return (x - mu) * jax.lax.rsqrt(var + EPS) * g + b

    h = ln(z, params["ln1_g"], params["ln1_b"])
    q = h @ params["wq"] + params["bq"]
    k = h @ params["wk"] + params["bk"]
    v = h @ params["wv"] + params["bv"]
    q = q.reshape(B, N, num_heads, hd).transpose(0, 2, 1, 3)
    k = k.reshape(B, N, num_heads, hd).transpose(0, 2, 1, 3)
    v = v.reshape(B, N, num_heads, hd).transpose(0, 2, 1, 3)
    s = jnp.einsum("bhnd,bhmd->bhnm", q, k) / (hd ** 0.5)
    p = jax.nn.softmax(s, axis=-1)
    a = jnp.einsum("bhnm,bhmd->bhnd", p, v).transpose(0, 2, 1, 3).reshape(B, N, D)
    z1 = z + (a @ params["wo"] + params["bo"])
    h2 = ln(z1, params["ln2_g"], params["ln2_b"])
    m = jax.nn.gelu(h2 @ params["w1"] + params["b1"], approximate=False)
    return z1 + (m @ params["w2"] + params["b2"])


def make_params(key, emb_dim, hidden_dim):
    keys = jax.random.split(key, 8)
    n = lambda k, shape: (0.02 * jax.random.normal(k, shape)).astype(jnp.float32)
    # biases / LN affine params kept 2D (1, X) for friendly TPU layouts.
    return {
        "ln1_g": jnp.ones((1, emb_dim), jnp.float32),
        "ln1_b": jnp.zeros((1, emb_dim), jnp.float32),
        "wq": n(keys[0], (emb_dim, emb_dim)), "bq": jnp.zeros((1, emb_dim), jnp.float32),
        "wk": n(keys[1], (emb_dim, emb_dim)), "bk": jnp.zeros((1, emb_dim), jnp.float32),
        "wv": n(keys[2], (emb_dim, emb_dim)), "bv": jnp.zeros((1, emb_dim), jnp.float32),
        "wo": n(keys[3], (emb_dim, emb_dim)), "bo": jnp.zeros((1, emb_dim), jnp.float32),
        "ln2_g": jnp.ones((1, emb_dim), jnp.float32),
        "ln2_b": jnp.zeros((1, emb_dim), jnp.float32),
        "w1": n(keys[4], (emb_dim, hidden_dim)),
        "b1": jnp.zeros((1, hidden_dim), jnp.float32),
        "w2": n(keys[5], (hidden_dim, emb_dim)),
        "b2": jnp.zeros((1, emb_dim), jnp.float32),
    }


if __name__ == "__main__":
    # Small shapes chosen so every tiling path is exercised:
    # grid = (B=2, n_qt=2, n_ht=2); flash loop has 2 K-tiles; KV kernel grid (2, 2).
    B, N, emb_dim, head, hidden_dim = 2, 16, 32, 4, 256

    key = jax.random.PRNGKey(0)
    kz, kp = jax.random.split(key)
    z = jax.random.normal(kz, (B, N, emb_dim), dtype=jnp.float32)
    params = make_params(kp, emb_dim, hidden_dim)

    out = vit_encoder_block(z, params, num_heads=head,
                            q_tile=8, k_tile=8, kv_tile=8, h_tile=128)
    out = jax.block_until_ready(out)

    ref = _reference(z, params, head)
    assert out.shape == (B, N, emb_dim)
    assert bool(jnp.all(jnp.isfinite(out)))
    # tolerance reflects bf16 MXU operands (weights + activations) vs f32 reference.
    assert jnp.allclose(out, ref, rtol=2e-2, atol=2e-2), "mismatch vs JAX reference"

    print("KERNEL_OK")
</pallas_src>

<mosaic_0001>
module attributes {stable_mosaic.version = 11 : i64} {
  func.func @kv_proj_kernel(%arg0: i32, %arg1: i32, %arg2: memref<1x8x32xf32, #tpu.memory_space<vmem>>, %arg3: memref<1x32xf32, #tpu.memory_space<vmem>>, %arg4: memref<1x32xf32, #tpu.memory_space<vmem>>, %arg5: memref<32x32xbf16, #tpu.memory_space<vmem>>, %arg6: memref<1x32xf32, #tpu.memory_space<vmem>>, %arg7: memref<32x32xbf16, #tpu.memory_space<vmem>>, %arg8: memref<1x32xf32, #tpu.memory_space<vmem>>, %arg9: memref<1x4x8x8xbf16, #tpu.memory_space<vmem>>, %arg10: memref<1x4x8x8xbf16, #tpu.memory_space<vmem>>) attributes {dimension_semantics = [#tpu.dimension_semantics<parallel>, #tpu.dimension_semantics<parallel>], iteration_bounds = array<i64: 2, 2>, scalar_prefetch = 0 : i64, scratch_operands = 0 : i64, tpu.core_type = #tpu.core_type<tc>, window_params = [{transform_indices = @transform_0, window_bounds = array<i64: 1, 8, 32>}, {pipeline_mode = #tpu.pipeline_mode<synchronous>, transform_indices = @transform_1, window_bounds = array<i64: 1, 32>}, {pipeline_mode = #tpu.pipeline_mode<synchronous>, transform_indices = @transform_2, window_bounds = array<i64: 1, 32>}, {pipeline_mode = #tpu.pipeline_mode<synchronous>, transform_indices = @transform_3, window_bounds = array<i64: 32, 32>}, {pipeline_mode = #tpu.pipeline_mode<synchronous>, transform_indices = @transform_4, window_bounds = array<i64: 1, 32>}, {pipeline_mode = #tpu.pipeline_mode<synchronous>, transform_indices = @transform_5, window_bounds = array<i64: 32, 32>}, {pipeline_mode = #tpu.pipeline_mode<synchronous>, transform_indices = @transform_6, window_bounds = array<i64: 1, 32>}, {transform_indices = @transform_7, window_bounds = array<i64: 1, 4, 8, 8>}, {transform_indices = @transform_8, window_bounds = array<i64: 1, 4, 8, 8>}]} {
    %c0 = arith.constant 0 : index
    %c0_0 = arith.constant 0 : index
    %c0_1 = arith.constant 0 : index
    %0 = vector.load %arg2[%c0, %c0_0, %c0_1] : memref<1x8x32xf32, #tpu.memory_space<vmem>>, vector<1x8x32xf32>
    %1 = vector.shape_cast %0 : vector<1x8x32xf32> to vector<8x32xf32>
    %c0_2 = arith.constant 0 : index
    %c0_3 = arith.constant 0 : index
    %2 = vector.load %arg3[%c0_2, %c0_3] : memref<1x32xf32, #tpu.memory_space<vmem>>, vector<1x32xf32>
    %c0_4 = arith.constant 0 : index
    %c0_5 = arith.constant 0 : index
    %3 = vector.load %arg4[%c0_4, %c0_5] : memref<1x32xf32, #tpu.memory_space<vmem>>, vector<1x32xf32>
    %cst = arith.constant dense<0.000000e+00> : vector<8xf32>
    %4 = vector.multi_reduction <add>, %1, %cst [1] : vector<8x32xf32> to vector<8xf32>
    %5 = vector.shape_cast %4 : vector<8xf32> to vector<8x1xf32>
    %cst_6 = arith.constant 3.200000e+01 : f32
    %6 = vector.broadcast %cst_6 : f32 to vector<8x1xf32>
    %7 = arith.divf %5, %6 : vector<8x1xf32>
    %8 = vector.broadcast %7 : vector<8x1xf32> to vector<8x32xf32>
    %9 = arith.subf %1, %8 : vector<8x32xf32>
    %10 = arith.mulf %9, %9 : vector<8x32xf32>
    %cst_7 = arith.constant dense<0.000000e+00> : vector<8xf32>
    %11 = vector.multi_reduction <add>, %10, %cst_7 [1] : vector<8x32xf32> to vector<8xf32>
    %12 = vector.shape_cast %11 : vector<8xf32> to vector<8x1xf32>
    %cst_8 = arith.constant 3.200000e+01 : f32
    %13 = vector.broadcast %cst_8 : f32 to vector<8x1xf32>
    %14 = arith.divf %12, %13 : vector<8x1xf32>
    %15 = vector.broadcast %7 : vector<8x1xf32> to vector<8x32xf32>
    %16 = arith.subf %1, %15 : vector<8x32xf32>
    %cst_9 = arith.constant 9.99999974E-6 : f32
    %17 = vector.broadcast %cst_9 : f32 to vector<8x1xf32>
    %18 = arith.addf %14, %17 : vector<8x1xf32>
    %19 = math.rsqrt %18 : vector<8x1xf32>
    %20 = vector.broadcast %19 : vector<8x1xf32> to vector<8x32xf32>
    %21 = arith.mulf %16, %20 : vector<8x32xf32>
    %22 = vector.broadcast %2 : vector<1x32xf32> to vector<8x32xf32>
    %23 = arith.mulf %21, %22 : vector<8x32xf32>
    %24 = vector.broadcast %3 : vector<1x32xf32> to vector<8x32xf32>
    %25 = arith.addf %23, %24 : vector<8x32xf32>
    %26 = arith.truncf %25 : vector<8x32xf32> to vector<8x32xbf16>
    %c0_10 = arith.constant 0 : index
    %c0_11 = arith.constant 0 : index
    %27 = vector.load %arg5[%c0_10, %c0_11] : memref<32x32xbf16, #tpu.memory_space<vmem>>, vector<32x32xbf16>
    %cst_12 = arith.constant dense<0.000000e+00> : vector<8x32xf32>
    %28 = tpu.matmul %26, %27, %cst_12 {dimension_numbers = #tpu.dot_dimension_numbers<[1], [0], [0], [1], [0, 0, 1, 1], [], []>} : vector<8x32xbf16>, vector<32x32xbf16>, vector<8x32xf32> -> vector<8x32xf32>
    %c0_13 = arith.constant 0 : index
    %c0_14 = arith.constant 0 : index
    %29 = vector.load %arg6[%c0_13, %c0_14] : memref<1x32xf32, #tpu.memory_space<vmem>>, vector<1x32xf32>
    %30 = vector.broadcast %29 : vector<1x32xf32> to vector<8x32xf32>
    %31 = arith.addf %28, %30 : vector<8x32xf32>
    %c0_15 = arith.constant 0 : index
    %c0_16 = arith.constant 0 : index
    %32 = vector.load %arg7[%c0_15, %c0_16] : memref<32x32xbf16, #tpu.memory_space<vmem>>, vector<32x32xbf16>
    %cst_17 = arith.constant dense<0.000000e+00> : vector<8x32xf32>
    %33 = tpu.matmul %26, %32, %cst_17 {dimension_numbers = #tpu.dot_dimension_numbers<[1], [0], [0], [1], [0, 0, 1, 1], [], []>} : vector<8x32xbf16>, vector<32x32xbf16>, vector<8x32xf32> -> vector<8x32xf32>
    %c0_18 = arith.constant 0 : index
    %c0_19 = arith.constant 0 : index
    %34 = vector.load %arg8[%c0_18, %c0_19] : memref<1x32xf32, #tpu.memory_space<vmem>>, vector<1x32xf32>
    %35 = vector.broadcast %34 : vector<1x32xf32> to vector<8x32xf32>
    %36 = arith.addf %33, %35 : vector<8x32xf32>
    %37 = vector.extract_strided_slice %31 {offsets = [0, 0], sizes = [8, 8], strides = [1, 1]} : vector<8x32xf32> to vector<8x8xf32>
    %38 = arith.truncf %37 : vector<8x8xf32> to vector<8x8xbf16>
    %c0_20 = arith.constant 0 : index
    %c0_21 = arith.constant 0 : index
    %c0_22 = arith.constant 0 : index
    %c0_23 = arith.constant 0 : index
    %39 = vector.load %arg9[%c0_20, %c0_21, %c0_22, %c0_23] : memref<1x4x8x8xbf16, #tpu.memory_space<vmem>>, vector<1x1x8x8xbf16>
    %40 = vector.shape_cast %39 : vector<1x1x8x8xbf16> to vector<8x8xbf16>
    %41 = vector.shape_cast %38 : vector<8x8xbf16> to vector<1x1x8x8xbf16>
    tpu.vector_store %arg9[%c0_20, %c0_21, %c0_22, %c0_23], %41 {strides = array<i32>} : memref<1x4x8x8xbf16, #tpu.memory_space<vmem>>, vector<1x1x8x8xbf16>,
    %42 = vector.extract_strided_slice %36 {offsets = [0, 0], sizes = [8, 8], strides = [1, 1]} : vector<8x32xf32> to vector<8x8xf32>
    %43 = arith.truncf %42 : vector<8x8xf32> to vector<8x8xbf16>
    %c0_24 = arith.constant 0 : index
    %c0_25 = arith.constant 0 : index
    %c0_26 = arith.constant 0 : index
    %c0_27 = arith.constant 0 : index
    %44 = vector.load %arg10[%c0_24, %c0_25, %c0_26, %c0_27] : memref<1x4x8x8xbf16, #tpu.memory_space<vmem>>, vector<1x1x8x8xbf16>
    %45 = vector.shape_cast %44 : vector<1x1x8x8xbf16> to vector<8x8xbf16>
    %46 = vector.shape_cast %43 : vector<8x8xbf16> to vector<1x1x8x8xbf16>
    tpu.vector_store %arg10[%c0_24, %c0_25, %c0_26, %c0_27], %46 {strides = array<i32>} : memref<1x4x8x8xbf16, #tpu.memory_space<vmem>>, vector<1x1x8x8xbf16>,
    %47 = vector.extract_strided_slice %31 {offsets = [0, 8], sizes = [8, 8], strides = [1, 1]} : vector<8x32xf32> to vector<8x8xf32>
    %48 = arith.truncf %47 : vector<8x8xf32> to vector<8x8xbf16>
    %c0_28 = arith.constant 0 : index
    %c1 = arith.constant 1 : index
    %c0_29 = arith.constant 0 : index
    %c0_30 = arith.constant 0 : index
    %49 = vector.load %arg9[%c0_28, %c1, %c0_29, %c0_30] : memref<1x4x8x8xbf16, #tpu.memory_space<vmem>>, vector<1x1x8x8xbf16>
    %50 = vector.shape_cast %49 : vector<1x1x8x8xbf16> to vector<8x8xbf16>
    %51 = vector.shape_cast %48 : vector<8x8xbf16> to vector<1x1x8x8xbf16>
    tpu.vector_store %arg9[%c0_28, %c1, %c0_29, %c0_30], %51 {strides = array<i32>} : memref<1x4x8x8xbf16, #tpu.memory_space<vmem>>, vector<1x1x8x8xbf16>,
    %52 = vector.extract_strided_slice %36 {offsets = [0, 8], sizes = [8, 8], strides = [1, 1]} : vector<8x32xf32> to vector<8x8xf32>
    %53 = arith.truncf %52 : vector<8x8xf32> to vector<8x8xbf16>
    %c0_31 = arith.constant 0 : index
    %c1_32 = arith.constant 1 : index
    %c0_33 = arith.constant 0 : index
    %c0_34 = arith.constant 0 : index
    %54 = vector.load %arg10[%c0_31, %c1_32, %c0_33, %c0_34] : memref<1x4x8x8xbf16, #tpu.memory_space<vmem>>, vector<1x1x8x8xbf16>
    %55 = vector.shape_cast %54 : vector<1x1x8x8xbf16> to vector<8x8xbf16>
    %56 = vector.shape_cast %53 : vector<8x8xbf16> to vector<1x1x8x8xbf16>
    tpu.vector_store %arg10[%c0_31, %c1_32, %c0_33, %c0_34], %56 {strides = array<i32>} : memref<1x4x8x8xbf16, #tpu.memory_space<vmem>>, vector<1x1x8x8xbf16>,
    %57 = vector.extract_strided_slice %31 {offsets = [0, 16], sizes = [8, 8], strides = [1, 1]} : vector<8x32xf32> to vector<8x8xf32>
    %58 = arith.truncf %57 : vector<8x8xf32> to vector<8x8xbf16>
    %c0_35 = arith.constant 0 : index
    %c2 = arith.constant 2 : index
    %c0_36 = arith.constant 0 : index
    %c0_37 = arith.constant 0 : index
    %59 = vector.load %arg9[%c0_35, %c2, %c0_36, %c0_37] : memref<1x4x8x8xbf16, #tpu.memory_space<vmem>>, vector<1x1x8x8xbf16>
    %60 = vector.shape_cast %59 : vector<1x1x8x8xbf16> to vector<8x8xbf16>
    %61 = vector.shape_cast %58 : vector<8x8xbf16> to vector<1x1x8x8xbf16>
    tpu.vector_store %arg9[%c0_35, %c2, %c0_36, %c0_37], %61 {strides = array<i32>} : memref<1x4x8x8xbf16, #tpu.memory_space<vmem>>, vector<1x1x8x8xbf16>,
    %62 = vector.extract_strided_slice %36 {offsets = [0, 16], sizes = [8, 8], strides = [1, 1]} : vector<8x32xf32> to vector<8x8xf32>
    %63 = arith.truncf %62 : vector<8x8xf32> to vector<8x8xbf16>
    %c0_38 = arith.constant 0 : index
    %c2_39 = arith.constant 2 : index
    %c0_40 = arith.constant 0 : index
    %c0_41 = arith.constant 0 : index
    %64 = vector.load %arg10[%c0_38, %c2_39, %c0_40, %c0_41] : memref<1x4x8x8xbf16, #tpu.memory_space<vmem>>, vector<1x1x8x8xbf16>
    %65 = vector.shape_cast %64 : vector<1x1x8x8xbf16> to vector<8x8xbf16>
    %66 = vector.shape_cast %63 : vector<8x8xbf16> to vector<1x1x8x8xbf16>
    tpu.vector_store %arg10[%c0_38, %c2_39, %c0_40, %c0_41], %66 {strides = array<i32>} : memref<1x4x8x8xbf16, #tpu.memory_space<vmem>>, vector<1x1x8x8xbf16>,
    %67 = vector.extract_strided_slice %31 {offsets = [0, 24], sizes = [8, 8], strides = [1, 1]} : vector<8x32xf32> to vector<8x8xf32>
    %68 = arith.truncf %67 : vector<8x8xf32> to vector<8x8xbf16>
    %c0_42 = arith.constant 0 : index
    %c3 = arith.constant 3 : index
    %c0_43 = arith.constant 0 : index
    %c0_44 = arith.constant 0 : index
    %69 = vector.load %arg9[%c0_42, %c3, %c0_43, %c0_44] : memref<1x4x8x8xbf16, #tpu.memory_space<vmem>>, vector<1x1x8x8xbf16>
    %70 = vector.shape_cast %69 : vector<1x1x8x8xbf16> to vector<8x8xbf16>
    %71 = vector.shape_cast %68 : vector<8x8xbf16> to vector<1x1x8x8xbf16>
    tpu.vector_store %arg9[%c0_42, %c3, %c0_43, %c0_44], %71 {strides = array<i32>} : memref<1x4x8x8xbf16, #tpu.memory_space<vmem>>, vector<1x1x8x8xbf16>,
    %72 = vector.extract_strided_slice %36 {offsets = [0, 24], sizes = [8, 8], strides = [1, 1]} : vector<8x32xf32> to vector<8x8xf32>
    %73 = arith.truncf %72 : vector<8x8xf32> to vector<8x8xbf16>
    %c0_45 = arith.constant 0 : index
    %c3_46 = arith.constant 3 : index
    %c0_47 = arith.constant 0 : index
    %c0_48 = arith.constant 0 : index
    %74 = vector.load %arg10[%c0_45, %c3_46, %c0_47, %c0_48] : memref<1x4x8x8xbf16, #tpu.memory_space<vmem>>, vector<1x1x8x8xbf16>
    %75 = vector.shape_cast %74 : vector<1x1x8x8xbf16> to vector<8x8xbf16>
    %76 = vector.shape_cast %73 : vector<8x8xbf16> to vector<1x1x8x8xbf16>
    tpu.vector_store %arg10[%c0_45, %c3_46, %c0_47, %c0_48], %76 {strides = array<i32>} : memref<1x4x8x8xbf16, #tpu.memory_space<vmem>>, vector<1x1x8x8xbf16>,
    return
  }
  func.func @transform_0(%arg0: i32, %arg1: i32) -> (i32, i32, i32) {
    %c0_i32 = arith.constant 0 : i32
    %c0_i32_0 = arith.constant 0 : i32
    return %arg0, %arg1, %c0_i32 : i32, i32, i32
  }
  func.func @transform_1(%arg0: i32, %arg1: i32) -> (i32, i32) {
    %c0_i32 = arith.constant 0 : i32
    %c0_i32_0 = arith.constant 0 : i32
    %c0_i32_1 = arith.constant 0 : i32
    return %c0_i32, %c0_i32_0 : i32, i32
  }
  func.func @transform_2(%arg0: i32, %arg1: i32) -> (i32, i32) {
    %c0_i32 = arith.constant 0 : i32
    %c0_i32_0 = arith.constant 0 : i32
    %c0_i32_1 = arith.constant 0 : i32
    return %c0_i32, %c0_i32_0 : i32, i32
  }
  func.func @transform_3(%arg0: i32, %arg1: i32) -> (i32, i32) {
    %c0_i32 = arith.constant 0 : i32
    %c0_i32_0 = arith.constant 0 : i32
    %c0_i32_1 = arith.constant 0 : i32
    return %c0_i32, %c0_i32_0 : i32, i32
  }
  func.func @transform_4(%arg0: i32, %arg1: i32) -> (i32, i32) {
    %c0_i32 = arith.constant 0 : i32
    %c0_i32_0 = arith.constant 0 : i32
    %c0_i32_1 = arith.constant 0 : i32
    return %c0_i32, %c0_i32_0 : i32, i32
  }
  func.func @transform_5(%arg0: i32, %arg1: i32) -> (i32, i32) {
    %c0_i32 = arith.constant 0 : i32
    %c0_i32_0 = arith.constant 0 : i32
    %c0_i32_1 = arith.constant 0 : i32
    return %c0_i32, %c0_i32_0 : i32, i32
  }
  func.func @transform_6(%arg0: i32, %arg1: i32) -> (i32, i32) {
    %c0_i32 = arith.constant 0 : i32
    %c0_i32_0 = arith.constant 0 : i32
    %c0_i32_1 = arith.constant 0 : i32
    return %c0_i32, %c0_i32_0 : i32, i32
  }
  func.func @transform_7(%arg0: i32, %arg1: i32) -> (i32, i32, i32, i32) {
    %c0_i32 = arith.constant 0 : i32
    %c0_i32_0 = arith.constant 0 : i32
    %c0_i32_1 = arith.constant 0 : i32
    return %arg0, %c0_i32, %arg1, %c0_i32_0 : i32, i32, i32, i32
  }
  func.func @transform_8(%arg0: i32, %arg1: i32) -> (i32, i32, i32, i32) {
    %c0_i32 = arith.constant 0 : i32
    %c0_i32_0 = arith.constant 0 : i32
    %c0_i32_1 = arith.constant 0 : i32
    return %arg0, %c0_i32, %arg1, %c0_i32_0 : i32, i32, i32, i32
  }
}

</mosaic_0001>

<llo_original>
// kernel: tpu_custom_call.1
$region0: #{tpu_custom_call.1}
  #allocation0 [shape = 'u32[]', space=smem, size = 0x4, offset = 0x4, fixed_abs, tag = 'smem constant byte address 0x4 - core index']
  #allocation1 [shape = 'u32[144,128]{1,0:T(1,128)}', space=vmem, size = 0x12000, scoped, tag = 'internal scratch']
  %s0 = inlined_call_operand.hbm [shape: f32[2,16,32], index: 0, kind: input, shape index: {}]
  %s1 = inlined_call_operand.hbm [shape: f32[1,32], index: 1, kind: input, shape index: {}]
  %s2 = inlined_call_operand.hbm [shape: f32[1,32], index: 2, kind: input, shape index: {}]
  %s3 = inlined_call_operand.hbm [shape: bf16[32,32], index: 3, kind: input, shape index: {}]
  %s4 = inlined_call_operand.hbm [shape: f32[1,32], index: 4, kind: input, shape index: {}]
  %s5 = inlined_call_operand.hbm [shape: bf16[32,32], index: 5, kind: input, shape index: {}]
  %s6 = inlined_call_operand.hbm [shape: f32[1,32], index: 6, kind: input, shape index: {}]
  %s7 = inlined_call_operand.hbm [shape: bf16[2,4,16,8], index: 7, kind: output, shape index: {0}]
  %s8 = inlined_call_operand.hbm [shape: bf16[2,4,16,8], index: 8, kind: output, shape index: {1}]
  %9 = xla_tuple %s7, %s8
  %s10 = sld [smem:[#allocation0]]
  $region97: #{tpu_custom_call.1} parent=0
    _
  %s12 = ssub.s32 1, %s10
  %s13 = scalar_select 0, %s12, %s10
  $region1: #{tpu_custom_call.1} parent=0
    #allocation2 [shape = 'u8[8192]{0}', space=vmem, size = 0x2000, scoped, tag = 'input window, operand 0']
    #allocation3 [shape = 's32[2]{0}', space=sflag, size = 0x8, scoped, tag = 'scoped memory for tpu_custom_call.1']
    #allocation4 [shape = 's32[2]{0}', space=sflag, size = 0x8, scoped, tag = 'scoped memory for tpu_custom_call.1']
    #allocation5 [shape = 'u8[512]{0}', space=vmem, size = 0x400, scoped, tag = 'input window, operand 1, single buffered']
    #allocation6 [shape = 's32[1]{0}', space=sflag, size = 0x4, scoped, tag = 'scoped memory for tpu_custom_call.1']
    #allocation7 [shape = 'u8[512]{0}', space=vmem, size = 0x400, scoped, tag = 'input window, operand 2, single buffered']
    #allocation8 [shape = 'u8[8192]{0}', space=vmem, size = 0x2000, scoped, tag = 'input window, operand 3, single buffered']
    #allocation9 [shape = 's32[1]{0}', space=sflag, size = 0x4, scoped, tag = 'scoped memory for tpu_custom_call.1']
    #allocation10 [shape = 'u8[512]{0}', space=vmem, size = 0x400, scoped, tag = 'input window, operand 4, single buffered']
    #allocation11 [shape = 'u8[8192]{0}', space=vmem, size = 0x2000, scoped, tag = 'input window, operand 5, single buffered']
    #allocation12 [shape = 's32[1]{0}', space=sflag, size = 0x4, scoped, tag = 'scoped memory for tpu_custom_call.1']
    #allocation13 [shape = 'u8[512]{0}', space=vmem, size = 0x400, scoped, tag = 'input window, operand 6, single buffered']
    #allocation14 [shape = 'u8[16384]{0}', space=vmem, size = 0x4000, scoped, tag = 'output window, operand 0']
    #allocation15 [shape = 'u8[16384]{0}', space=vmem, size = 0x4000, scoped, tag = 'output window, operand 1']
    #allocation16 [shape = 's32[2]{0}', space=sflag, size = 0x8, scoped, tag = 'scoped memory for tpu_custom_call.1']
    %14 = vsyncpa [#allocation3], 0
    %s15 = scalar_lea.sflag [#allocation3], 1
    %16 = vsyncpa %s15, 0
    %17 = vsyncpa [#allocation6], 0
    %18 = vsyncpa [#allocation9], 0
    %19 = vsyncpa [#allocation12], 0
    %20 = vsyncpa [#allocation4], 0
    %s21 = scalar_lea.sflag [#allocation4], 1
    %22 = vsyncpa %s21, 0
    %23 = vsyncpa [#allocation16], 0
    %s24 = scalar_lea.sflag [#allocation16], 1
    %25 = vsyncpa %s24, 0
    loop: start=0, step=1, limit=6
    $region2: #{tpu_custom_call.1} parent=1 // loop_pre_header
      _
    $region3: #{tpu_custom_call.1} parent=1 // loop_header
      %s27 = sphi 0, %s31
      %p28 = scmp.ge.s32.totalorder %s27, 6
      %s34 = sphi 0, %s46
      %s35 = sphi 0, %s42
      %s36 = sphi 0, %s34
      %s37 = sphi 0, %s35
      %s38 = sphi 0, %s36
      %s39 = sphi 0, %s37
      %s51 = sphi 0, %s53
      %s54 = sphi 0, %s51
      %s55 = sphi 0, %s54
      %s71 = sphi 0, %s55
      %s75 = sphi 0, %s75
      %s77 = sphi 0, %s75
      %s78 = sphi 0, %s77
      %s92 = sphi 0, %s78
      %s96 = sphi 0, %s96
      %s98 = sphi 0, %s96
      %s99 = sphi 0, %s98
      %s113 = sphi 0, %s99
      %s117 = sphi 0, %s117
      %s119 = sphi 0, %s117
      %s120 = sphi 0, %s119
      %s134 = sphi 0, %s120
      %s138 = sphi 0, %s138
      %s140 = sphi 0, %s138
      %s141 = sphi 0, %s140
      %s155 = sphi 0, %s141
      %s159 = sphi 0, %s159
      %s161 = sphi 0, %s159
      %s162 = sphi 0, %s161
      %s176 = sphi 0, %s162
      %s180 = sphi 0, %s180
      %s182 = sphi 0, %s180
      %s183 = sphi 0, %s182
      %s197 = sphi 0, %s183
      %s205 = sphi 0, %s207
      %s208 = sphi 0, %s205
      %s209 = sphi 0, %s208
      %s225 = sphi 0, %s209
      %s233 = sphi 0, %s235
      %s236 = sphi 0, %s233
      %s237 = sphi 0, %s236
      %s253 = sphi 0, %s237
    $region4: #{tpu_custom_call.1} parent=1 // loop_header_branch
      %30 = sbr.rel (%p28) target = $region8
    $region5: #{tpu_custom_call.1} parent=1 // loop_body
      %s32 = ssub.s32 %s27, 1
      %s33 = ssub.s32 %s27, 2
      %s40 = sadd.s32 1, %s35
      %p41 = scmp.ge.s32.totalorder %s40, 2
      %s42 = scalar_select %p41, 0, %s40
      %s43 = sadd.s32 1, %s34
      %s44 = scalar_select %p41, %s43, %s34
      %p45 = scmp.ge.s32.totalorder %s44, 2
      %s46 = scalar_select %p45, 0, %s44
      %s47 = ssub.s32 %s34, %s46
      %s48 = ssub.s32 %s35, %s42
      %s49 = sor.u32 %s47, %s48
      %p50 = scmp.eq.s32.totalorder %s49, 0
      %s52 = sadd.s32 %s51, 1
      %s53 = scalar_select %p50, %s51, %s52
      %p56 = pneg %p50
      %p57 = scmp.eq.s32.totalorder %s27, 3
      %p58 = por %p56, %p57
      %p59 = scmp.ne.s32.totalorder %s51, %s54
      %p60 = scmp.eq.s32.totalorder %s27, 0
      %p61 = por %p59, %p60
      %p62 = scmp.ne.s32.totalorder %s51, %s54
      %p63 = scmp.eq.s32.totalorder %s32, 3
      %p64 = por %p62, %p63
      %p65 = scmp.ne.s32.totalorder %s54, %s55
      %p66 = scmp.eq.s32.totalorder %s32, 0
      %p67 = por %p65, %p66
      %p68 = scmp.ne.s32.totalorder %s54, %s55
      %p69 = scmp.eq.s32.totalorder %s33, 3
      %p70 = por %p68, %p69
      %p72 = scmp.ne.s32.totalorder %s55, %s71
      %p73 = scmp.eq.s32.totalorder %s33, 0
      %p74 = por %p72, %p73
      %s76 = sadd.s32 %s75, 1
      %p79 = scmp.eq.s32.totalorder %s27, 3
      %p80 = scmp.ne.s32.totalorder %s75, %s77
      %p81 = scmp.eq.s32.totalorder %s27, 0
      %p82 = por %p80, %p81
      %p83 = scmp.ne.s32.totalorder %s75, %s77
      %p84 = scmp.eq.s32.totalorder %s32, 3
      %p85 = por %p83, %p84
      %p86 = scmp.ne.s32.totalorder %s77, %s78
      %p87 = scmp.eq.s32.totalorder %s32, 0
      %p88 = por %p86, %p87
      %p89 = scmp.ne.s32.totalorder %s77, %s78
      %p90 = scmp.eq.s32.totalorder %s33, 3
      %p91 = por %p89, %p90
      %p93 = scmp.ne.s32.totalorder %s78, %s92
      %p94 = scmp.eq.s32.totalorder %s33, 0
      %p95 = por %p93, %p94
      %s97 = sadd.s32 %s96, 1
      %p100 = scmp.eq.s32.totalorder %s27, 3
      %p101 = scmp.ne.s32.totalorder %s96, %s98
      %p102 = scmp.eq.s32.totalorder %s27, 0
      %p103 = por %p101, %p102
      %p104 = scmp.ne.s32.totalorder %s96, %s98
      %p105 = scmp.eq.s32.totalorder %s32, 3
      %p106 = por %p104, %p105
      %p107 = scmp.ne.s32.totalorder %s98, %s99
      %p108 = scmp.eq.s32.totalorder %s32, 0
      %p109 = por %p107, %p108
      %p110 = scmp.ne.s32.totalorder %s98, %s99
      %p111 = scmp.eq.s32.totalorder %s33, 3
      %p112 = por %p110, %p111
      %p114 = scmp.ne.s32.totalorder %s99, %s113
      %p115 = scmp.eq.s32.totalorder %s33, 0
      %p116 = por %p114, %p115
      %s118 = sadd.s32 %s117, 1
      %p121 = scmp.eq.s32.totalorder %s27, 3
      %p122 = scmp.ne.s32.totalorder %s117, %s119
      %p123 = scmp.eq.s32.totalorder %s27, 0
      %p124 = por %p122, %p123
      %p125 = scmp.ne.s32.totalorder %s117, %s119
      %p126 = scmp.eq.s32.totalorder %s32, 3
      %p127 = por %p125, %p126
      %p128 = scmp.ne.s32.totalorder %s119, %s120
      %p129 = scmp.eq.s32.totalorder %s32, 0
      %p130 = por %p128, %p129
      %p131 = scmp.ne.s32.totalorder %s119, %s120
      %p132 = scmp.eq.s32.totalorder %s33, 3
      %p133 = por %p131, %p132
      %p135 = scmp.ne.s32.totalorder %s120, %s134
      %p136 = scmp.eq.s32.totalorder %s33, 0
      %p137 = por %p135, %p136
      %s139 = sadd.s32 %s138, 1
      %p142 = scmp.eq.s32.totalorder %s27, 3
      %p143 = scmp.ne.s32.totalorder %s138, %s140
      %p144 = scmp.eq.s32.totalorder %s27, 0
      %p145 = por %p143, %p144
      %p146 = scmp.ne.s32.totalorder %s138, %s140
      %p147 = scmp.eq.s32.totalorder %s32, 3
      %p148 = por %p146, %p147
      %p149 = scmp.ne.s32.totalorder %s140, %s141
      %p150 = scmp.eq.s32.totalorder %s32, 0
      %p151 = por %p149, %p150
      %p152 = scmp.ne.s32.totalorder %s140, %s141
      %p153 = scmp.eq.s32.totalorder %s33, 3
      %p154 = por %p152, %p153
      %p156 = scmp.ne.s32.totalorder %s141, %s155
      %p157 = scmp.eq.s32.totalorder %s33, 0
      %p158 = por %p156, %p157
      %s160 = sadd.s32 %s159, 1
      %p163 = scmp.eq.s32.totalorder %s27, 3
      %p164 = scmp.ne.s32.totalorder %s159, %s161
      %p165 = scmp.eq.s32.totalorder %s27, 0
      %p166 = por %p164, %p165
      %p167 = scmp.ne.s32.totalorder %s159, %s161
      %p168 = scmp.eq.s32.totalorder %s32, 3
      %p169 = por %p167, %p168
      %p170 = scmp.ne.s32.totalorder %s161, %s162
      %p171 = scmp.eq.s32.totalorder %s32, 0
      %p172 = por %p170, %p171
      %p173 = scmp.ne.s32.totalorder %s161, %s162
      %p174 = scmp.eq.s32.totalorder %s33, 3
      %p175 = por %p173, %p174
      %p177 = scmp.ne.s32.totalorder %s162, %s176
      %p178 = scmp.eq.s32.totalorder %s33, 0
      %p179 = por %p177, %p178
      %s181 = sadd.s32 %s180, 1
      %p184 = scmp.eq.s32.totalorder %s27, 3
      %p185 = scmp.ne.s32.totalorder %s180, %s182
      %p186 = scmp.eq.s32.totalorder %s27, 0
      %p187 = por %p185, %p186
      %p188 = scmp.ne.s32.totalorder %s180, %s182
      %p189 = scmp.eq.s32.totalorder %s32, 3
      %p190 = por %p188, %p189
      %p191 = scmp.ne.s32.totalorder %s182, %s183
      %p192 = scmp.eq.s32.totalorder %s32, 0
      %p193 = por %p191, %p192
      %p194 = scmp.ne.s32.totalorder %s182, %s183
      %p195 = scmp.eq.s32.totalorder %s33, 3
      %p196 = por %p194, %p195
      %p198 = scmp.ne.s32.totalorder %s183, %s197
      %p199 = scmp.eq.s32.totalorder %s33, 0
      %p200 = por %p198, %p199
      %s201 = ssub.s32 %s34, %s46
      %s202 = ssub.s32 %s35, %s42
      %s203 = sor.u32 %s201, %s202
      %p204 = scmp.eq.s32.totalorder %s203, 0
      %s206 = sadd.s32 %s205, 1
      %s207 = scalar_select %p204, %s205, %s206
      %p210 = pneg %p204
      %p211 = scmp.eq.s32.totalorder %s27, 3
      %p212 = por %p210, %p211
      %p213 = scmp.ne.s32.totalorder %s205, %s208
      %p214 = scmp.eq.s32.totalorder %s27, 0
      %p215 = por %p213, %p214
      %p216 = scmp.ne.s32.totalorder %s205, %s208
      %p217 = scmp.eq.s32.totalorder %s32, 3
      %p218 = por %p216, %p217
      %p219 = scmp.ne.s32.totalorder %s208, %s209
      %p220 = scmp.eq.s32.totalorder %s32, 0
      %p221 = por %p219, %p220
      %p222 = scmp.ne.s32.totalorder %s208, %s209
      %p223 = scmp.eq.s32.totalorder %s33, 3
      %p224 = por %p222, %p223
      %p226 = scmp.ne.s32.totalorder %s209, %s225
      %p227 = scmp.eq.s32.totalorder %s33, 0
      %p228 = por %p226, %p227
      %s229 = ssub.s32 %s34, %s46
      %s230 = ssub.s32 %s35, %s42
      %s231 = sor.u32 %s229, %s230
      %p232 = scmp.eq.s32.totalorder %s231, 0
      %s234 = sadd.s32 %s233, 1
      %s235 = scalar_select %p232, %s233, %s234
      %p238 = pneg %p232
      %p239 = scmp.eq.s32.totalorder %s27, 3
      %p240 = por %p238, %p239
      %p241 = scmp.ne.s32.totalorder %s233, %s236
      %p242 = scmp.eq.s32.totalorder %s27, 0
      %p243 = por %p241, %p242
      %p244 = scmp.ne.s32.totalorder %s233, %s236
      %p245 = scmp.eq.s32.totalorder %s32, 3
      %p246 = por %p244, %p245
      %p247 = scmp.ne.s32.totalorder %s236, %s237
      %p248 = scmp.eq.s32.totalorder %s32, 0
      %p249 = por %p247, %p248
      %p250 = scmp.ne.s32.totalorder %s236, %s237
      %p251 = scmp.eq.s32.totalorder %s33, 3
      %p252 = por %p250, %p251
      %p254 = scmp.ne.s32.totalorder %s237, %s253
      %p255 = scmp.eq.s32.totalorder %s33, 0
      %p256 = por %p254, %p255
      %p257 = scmp.le.s32.totalorder 1, %s27
      %p258 = scmp.lt.s32.totalorder %s27, 5
      %p259 = pnand %p257, %p258
      %p260 = pneg %p259
      // Predicated region
      $region9: #{tpu_custom_call.1} parent=5 // pred_check
        _
      $region10: #{tpu_custom_call.1} parent=5 // pred_check_branch
        %262 = sbr.rel (%p259) target = $region12
      $region11: #{tpu_custom_call.1} parent=5 // pred_region
        %s263 = ssub.s32 %s27, 1
        // Predicated region
        $region13: #{tpu_custom_call.1} parent=11 // pred_check
          %p264 = pneg %p88
        $region14: #{tpu_custom_call.1} parent=11 // pred_check_branch
          %266 = sbr.rel (%p264) target = $region16
        $region15: #{tpu_custom_call.1} parent=11 // pred_region
          %s268 = ssub.s32 16, 16
          %269 = vsyncadd [#allocation6], %s268
          %s271 = sshll.u32 [#allocation5], 4
          %s272 = int_to_ptr.vmem [resolvable:$true] %s271
          %274 = dma.hbm_to_vmem [thread:$0]  %s1, 16, %s272, [#allocation6]
        $region16: #{tpu_custom_call.1} parent=11 // pred_fallthru
          _
        // Predicated region
        $region17: #{tpu_custom_call.1} parent=11 // pred_check
          %p275 = pneg %p109
        $region18: #{tpu_custom_call.1} parent=11 // pred_check_branch
          %277 = sbr.rel (%p275) target = $region20
        $region19: #{tpu_custom_call.1} parent=11 // pred_region
          %s279 = ssub.s32 16, 16
          %280 = vsyncadd [#allocation6], %s279
          %s282 = sshll.u32 [#allocation7], 4
          %s283 = int_to_ptr.vmem [resolvable:$true] %s282
          %285 = dma.hbm_to_vmem [thread:$0]  %s2, 16, %s283, [#allocation6]
        $region20: #{tpu_custom_call.1} parent=11 // pred_fallthru
          _
        // Predicated region
        $region21: #{tpu_custom_call.1} parent=11 // pred_check
          %p286 = pneg %p130
        $region22: #{tpu_custom_call.1} parent=11 // pred_check_branch
          %288 = sbr.rel (%p286) target = $region24
        $region23: #{tpu_custom_call.1} parent=11 // pred_region
          %s290 = ssub.s32 256, 256
          %291 = vsyncadd [#allocation9], %s290
          %s292 = sshll.u32 [#allocation8], 4
          %s293 = int_to_ptr.vmem [resolvable:$true] %s292
          %298 = dma.hbm_to_vmem [thread:$0]  %s3, 256, %s293, [#allocation9], 64, 64, 4
        $region24: #{tpu_custom_call.1} parent=11 // pred_fallthru
          _
        // Predicated region
        $region25: #{tpu_custom_call.1} parent=11 // pred_check
          %p299 = pneg %p151
        $region26: #{tpu_custom_call.1} parent=11 // pred_check_branch
          %301 = sbr.rel (%p299) target = $region28
        $region27: #{tpu_custom_call.1} parent=11 // pred_region
          %s303 = ssub.s32 16, 16
          %304 = vsyncadd [#allocation9], %s303
          %s306 = sshll.u32 [#allocation10], 4
          %s307 = int_to_ptr.vmem [resolvable:$true] %s306
          %309 = dma.hbm_to_vmem [thread:$0]  %s4, 16, %s307, [#allocation9]
        $region28: #{tpu_custom_call.1} parent=11 // pred_fallthru
          _
        // Predicated region
        $region29: #{tpu_custom_call.1} parent=11 // pred_check
          %p310 = pneg %p172
        $region30: #{tpu_custom_call.1} parent=11 // pred_check_branch
          %312 = sbr.rel (%p310) target = $region32
        $region31: #{tpu_custom_call.1} parent=11 // pred_region
          %s314 = ssub.s32 256, 256
          %315 = vsyncadd [#allocation12], %s314
          %s316 = sshll.u32 [#allocation11], 4
          %s317 = int_to_ptr.vmem [resolvable:$true] %s316
          %322 = dma.hbm_to_vmem [thread:$0]  %s5, 256, %s317, [#allocation12], 64, 64, 4
        $region32: #{tpu_custom_call.1} parent=11 // pred_fallthru
          _
        // Predicated region
        $region33: #{tpu_custom_call.1} parent=11 // pred_check
          %p323 = pneg %p193
        $region34: #{tpu_custom_call.1} parent=11 // pred_check_branch
          %325 = sbr.rel (%p323) target = $region36
        $region35: #{tpu_custom_call.1} parent=11 // pred_region
          %s327 = ssub.s32 16, 16
          %328 = vsyncadd [#allocation12], %s327
          %s330 = sshll.u32 [#allocation13], 4
          %s331 = int_to_ptr.vmem [resolvable:$true] %s330
          %333 = dma.hbm_to_vmem [thread:$0]  %s6, 16, %s331, [#allocation12]
        $region36: #{tpu_custom_call.1} parent=11 // pred_fallthru
          _
      $region12: #{tpu_custom_call.1} parent=5 // pred_fallthru
        _
      %p334 = scmp.lt.s32.totalorder %s27, 4
      // Predicated region
      $region37: #{tpu_custom_call.1} parent=5 // pred_check
        %p335 = pneg %p334
      $region38: #{tpu_custom_call.1} parent=5 // pred_check_branch
        %337 = sbr.rel (%p335) target = $region40
      $region39: #{tpu_custom_call.1} parent=5 // pred_region
        // Predicated region
        $region41: #{tpu_custom_call.1} parent=39 // pred_check
          %p338 = pneg %p61
        $region42: #{tpu_custom_call.1} parent=39 // pred_check_branch
          %340 = sbr.rel (%p338) target = $region44
        $region43: #{tpu_custom_call.1} parent=39 // pred_region
          %s341 = sand.u32 %s51, 1
          %s342 = scalar_lea.sflag [#allocation3], %s341
          %s343 = sand.u32 %s51, 1
          %s344 = smul.addr %s343, 8
          %s345 = scalar_lea.vmem [#allocation2], %s344
          %s347 = ssub.s32 128, 128
          %348 = vsyncadd %s342, %s347
          %s349 = smul.addr %s34, 2
          %s350 = sadd.s32 %s35, %s349
          %s351 = smul.addr %s350, 128
          %s352 = scalar_lea.hbm %s0, %s351
          %s354 = sshll.u32 %s345, 4
          %s355 = int_to_ptr.vmem [resolvable:$true] %s354
          %357 = dma.hbm_to_vmem [thread:$0]  %s352, 128, %s355, %s342
        $region44: #{tpu_custom_call.1} parent=39 // pred_fallthru
          _
      $region40: #{tpu_custom_call.1} parent=5 // pred_fallthru
        _
      %p358 = scmp.le.s32.totalorder 1, %s27
      %p359 = scmp.lt.s32.totalorder %s27, 5
      %p360 = pnand %p358, %p359
      %p361 = pneg %p360
      // Predicated region
      $region45: #{tpu_custom_call.1} parent=5 // pred_check
        _
      $region46: #{tpu_custom_call.1} parent=5 // pred_check_branch
        %363 = sbr.rel (%p360) target = $region48
      $region47: #{tpu_custom_call.1} parent=5 // pred_region
        %s364 = ssub.s32 %s27, 1
        %s365 = sand.u32 %s54, 1
        %s366 = scalar_lea.sflag [#allocation3], %s365
        %s367 = sand.u32 %s54, 1
        %s368 = smul.addr %s367, 8
        %s369 = scalar_lea.vmem [#allocation2], %s368
        // Predicated region
        $region49: #{tpu_custom_call.1} parent=47 // pred_check
          %p370 = pneg %p67
        $region50: #{tpu_custom_call.1} parent=47 // pred_check_branch
          %372 = sbr.rel (%p370) target = $region52
        $region51: #{tpu_custom_call.1} parent=47 // pred_region
          %373 = dma.done %s366, 128
        $region52: #{tpu_custom_call.1} parent=47 // pred_fallthru
          _
        // Predicated region
        $region53: #{tpu_custom_call.1} parent=47 // pred_check
          %p374 = pneg %p88
        $region54: #{tpu_custom_call.1} parent=47 // pred_check_branch
          %376 = sbr.rel (%p374) target = $region56
        $region55: #{tpu_custom_call.1} parent=47 // pred_region
          %377 = dma.done [#allocation6], 16
        $region56: #{tpu_custom_call.1} parent=47 // pred_fallthru
          _
        // Predicated region
        $region57: #{tpu_custom_call.1} parent=47 // pred_check
          %p378 = pneg %p109
        $region58: #{tpu_custom_call.1} parent=47 // pred_check_branch
          %380 = sbr.rel (%p378) target = $region60
        $region59: #{tpu_custom_call.1} parent=47 // pred_region
          %381 = dma.done [#allocation6], 16
        $region60: #{tpu_custom_call.1} parent=47 // pred_fallthru
          _
        // Predicated region
        $region61: #{tpu_custom_call.1} parent=47 // pred_check
          %p382 = pneg %p130
        $region62: #{tpu_custom_call.1} parent=47 // pred_check_branch
          %384 = sbr.rel (%p382) target = $region64
        $region63: #{tpu_custom_call.1} parent=47 // pred_region
          %385 = dma.done [#allocation9], 256
        $region64: #{tpu_custom_call.1} parent=47 // pred_fallthru
          _
        // Predicated region
        $region65: #{tpu_custom_call.1} parent=47 // pred_check
          %p386 = pneg %p151
        $region66: #{tpu_custom_call.1} parent=47 // pred_check_branch
          %388 = sbr.rel (%p386) target = $region68
        $region67: #{tpu_custom_call.1} parent=47 // pred_region
          %389 = dma.done [#allocation9], 16
        $region68: #{tpu_custom_call.1} parent=47 // pred_fallthru
          _
        // Predicated region
        $region69: #{tpu_custom_call.1} parent=47 // pred_check
          %p390 = pneg %p172
        $region70: #{tpu_custom_call.1} parent=47 // pred_check_branch
          %392 = sbr.rel (%p390) target = $region72
        $region71: #{tpu_custom_call.1} parent=47 // pred_region
          %393 = dma.done [#allocation12], 256
        $region72: #{tpu_custom_call.1} parent=47 // pred_fallthru
          _
        // Predicated region
        $region73: #{tpu_custom_call.1} parent=47 // pred_check
          %p394 = pneg %p193
        $region74: #{tpu_custom_call.1} parent=47 // pred_check_branch
          %396 = sbr.rel (%p394) target = $region76
        $region75: #{tpu_custom_call.1} parent=47 // pred_region
          %397 = dma.done [#allocation12], 16
        $region76: #{tpu_custom_call.1} parent=47 // pred_fallthru
          _
        %s398 = sand.u32 %s54, 1
        %s399 = scalar_lea.sflag [#allocation3], %s398
        %s400 = sand.u32 %s54, 1
        %s401 = smul.addr %s400, 8
        %s402 = scalar_lea.vmem [#allocation2], %s401
        %p403 = pneg %p67
        %p404 = pneg %p64
        %p405 = pneg %p88
        %p406 = pneg %p85
        %p407 = pneg %p109
        %p408 = pneg %p106
        %p409 = pneg %p130
        %p410 = pneg %p127
        %p411 = pneg %p151
        %p412 = pneg %p148
        %p413 = pneg %p172
        %p414 = pneg %p169
        %p415 = pneg %p193
        %p416 = pneg %p190
        %p417 = pneg %p221
        %p418 = pneg %p218
        %s419 = sand.u32 %s208, 1
        %s420 = scalar_lea.sflag [#allocation4], %s419
        %s421 = sand.u32 %s208, 1
        %s422 = smul.addr %s421, 16
        %s423 = scalar_lea.vmem [#allocation14], %s422
        %p424 = pneg %p249
        %p425 = pneg %p246
        %s426 = sand.u32 %s236, 1
        %s427 = scalar_lea.sflag [#allocation16], %s426
        %s428 = sand.u32 %s236, 1
        %s429 = smul.addr %s428, 16
        %s430 = scalar_lea.vmem [#allocation15], %s429
        %v432 = vld [vmem:[%s369] sm:$0xff]
        %v433 = vld [vmem:[#allocation5] sm:$0x1]
        %v434 = vld [vmem:[#allocation7] sm:$0x1]
        %vm435 = vcmask 261120
        %v436 = vsel %vm435, %v432, 0.0
        %437 = vadd.xlane.f32.xlu0 %v436
        %v438 = vpop.xlane.xlu0 %437
        %v439 = vrcp.pop 32.0
        %v440 = vmul.f32 %v438, %v439
        %v441 = vsub.f32 %v432, %v440
        %v442 = vmul.f32 %v441, %v441
        %v443 = vsel %vm435, %v442, 0.0
        %444 = vadd.xlane.f32.xlu0 %v443
        %v445 = vpop.xlane.xlu0 %444
        %v446 = vmul.f32 %v445, %v439
        %v447 = vadd.f32 %v446, 1e-05
        %v448 = vrsqrt.pop %v447
        %v449 = vmul.f32 %v441, %v448
        %v451 = vlaneseq
        %v452 = vshrl.u32 %v451, 7
        %v453 = vsub.s32 0, %v452
        %v454 = vrot.slane %v433, %v453
        %v456 = vmul.f32 %v449, %v454
        %v458 = vlaneseq
        %v459 = vshrl.u32 %v458, 7
        %v460 = vsub.s32 0, %v459
        %v461 = vrot.slane %v434, %v460
        %v463 = vadd.f32 %v456, %v461
        %v464 = vpack.c.bf16 %v463, %v463
        %v465 = vld [vmem:[#allocation8] sm:$0xf]
        %v466 = vld [vmem:[#allocation8 + $0x4] sm:$0xf]
        %v467 = vld [vmem:[#allocation8 + $0x8] sm:$0xf]
        %v468 = vld [vmem:[#allocation8 + $0xc] sm:$0xf]
        %v469 = vld [vmem:[#allocation10] sm:$0x1]
        %v471 = vlaneseq
        %v472 = vshrl.u32 %v471, 7
        %v473 = vsub.s32 0, %v472
        %v474 = vrot.slane %v469, %v473
        %v480 = vunpack.c.l.b16 %v465
        %v481 = vunpack.c.l.b16 %v466
        %v482 = vunpack.c.l.b16 %v467
        %v483 = vunpack.c.l.b16 %v468
        %v484 = vpack.c.b16 %v481, %v480
        %v485 = vpack.c.b16 %v483, %v482
        %v489 = vsel %vm435, %v464, 0
        %491 = vmatprep.subr.bf16.mxu0 0
        %492 = vmatpush1.bf16.msra.mxu0 %v484
        %493 = vmatprep.subr.bf16.mxu0 0
        %494 = vmatpush1.bf16.msra.mxu0 %v485
        %495 = vmatprep.subr.bf16.mxu0 0
        %496 = vmatpush1.bf16.msra.mxu0 0
        %497 = vmatprep.subr.bf16.mxu0 0
        %498 = vmatpush1.bf16.msra.mxu0 0
        %499 = vmatprep.subr.bf16.mxu0 0
        %500 = vmatpush1.bf16.msra.mxu0 0
        %501 = vmatprep.subr.bf16.mxu0 0
        %502 = vmatpush1.bf16.msra.mxu0 0
        %503 = vmatprep.subr.bf16.mxu0 0
        %504 = vmatpush1.bf16.msra.mxu0 0
        %505 = vmatprep.subr.bf16.mxu0 0
        %506 = vmatpush1.bf16.msra.mxu0 0
        %507 = vmatprep.subr.bf16.mxu0 0
        %508 = vmatpush1.bf16.msra.mxu0 0
        %509 = vmatprep.subr.bf16.mxu0 0
        %510 = vmatpush1.bf16.msra.mxu0 0
        %511 = vmatprep.subr.bf16.mxu0 0
        %512 = vmatpush1.bf16.msra.mxu0 0
        %513 = vmatprep.subr.bf16.mxu0 0
        %514 = vmatpush1.bf16.msra.mxu0 0
        %515 = vmatprep.subr.bf16.mxu0 0
        %516 = vmatpush1.bf16.msra.mxu0 0
        %517 = vmatprep.subr.bf16.mxu0 0
        %518 = vmatpush1.bf16.msra.mxu0 0
        %519 = vmatprep.subr.bf16.mxu0 0
        %520 = vmatpush1.bf16.msra.mxu0 0
        %521 = vmatprep.subr.bf16.mxu0 0
        %522 = vmatpush1.bf16.msra.mxu0 0
        %523 = vmatprep.mubr.bf16.mxu0 0
        %524 = vmatmul.mubr.bf16.gmra.mrb[0].mxu0 %v489
        %v525 = vpop.f32.mrb[0].mxu0
        %v526 = vadd.f32 %v474, %v525
        %v527 = vpop.f32.mrb[0].mxu0
        %v528 = vpop.f32.mrb[0].mxu0
        %v529 = vpop.f32.mrb[0].mxu0
        %530 = vdwg.mxu0
        %v531 = vld [vmem:[#allocation11] sm:$0xf]
        %v532 = vld [vmem:[#allocation11 + $0x4] sm:$0xf]
        %v533 = vld [vmem:[#allocation11 + $0x8] sm:$0xf]
        %v534 = vld [vmem:[#allocation11 + $0xc] sm:$0xf]
        %v535 = vld [vmem:[#allocation13] sm:$0x1]
        %v537 = vlaneseq
        %v538 = vshrl.u32 %v537, 7
        %v539 = vsub.s32 0, %v538
        %v540 = vrot.slane %v535, %v539
        %v546 = vunpack.c.l.b16 %v531
        %v547 = vunpack.c.l.b16 %v532
        %v548 = vunpack.c.l.b16 %v533
        %v549 = vunpack.c.l.b16 %v534
        %v550 = vpack.c.b16 %v547, %v546
        %v551 = vpack.c.b16 %v549, %v548
        %554 = vmatprep.subr.bf16.mxu0 0
        %555 = vmatpush1.bf16.msra.mxu0 %v550
        %556 = vmatprep.subr.bf16.mxu0 0
        %557 = vmatpush1.bf16.msra.mxu0 %v551
        %558 = vmatprep.subr.bf16.mxu0 0
        %559 = vmatpush1.bf16.msra.mxu0 0
        %560 = vmatprep.subr.bf16.mxu0 0
        %561 = vmatpush1.bf16.msra.mxu0 0
        %562 = vmatprep.subr.bf16.mxu0 0
        %563 = vmatpush1.bf16.msra.mxu0 0
        %564 = vmatprep.subr.bf16.mxu0 0
        %565 = vmatpush1.bf16.msra.mxu0 0
        %566 = vmatprep.subr.bf16.mxu0 0
        %567 = vmatpush1.bf16.msra.mxu0 0
        %568 = vmatprep.subr.bf16.mxu0 0
        %569 = vmatpush1.bf16.msra.mxu0 0
        %570 = vmatprep.subr.bf16.mxu0 0
        %571 = vmatpush1.bf16.msra.mxu0 0
        %572 = vmatprep.subr.bf16.mxu0 0
        %573 = vmatpush1.bf16.msra.mxu0 0
        %574 = vmatprep.subr.bf16.mxu0 0
        %575 = vmatpush1.bf16.msra.mxu0 0
        %576 = vmatprep.subr.bf16.mxu0 0
        %577 = vmatpush1.bf16.msra.mxu0 0
        %578 = vmatprep.subr.bf16.mxu0 0
        %579 = vmatpush1.bf16.msra.mxu0 0
        %580 = vmatprep.subr.bf16.mxu0 0
        %581 = vmatpush1.bf16.msra.mxu0 0
        %582 = vmatprep.subr.bf16.mxu0 0
        %583 = vmatpush1.bf16.msra.mxu0 0
        %584 = vmatprep.subr.bf16.mxu0 0
        %585 = vmatpush1.bf16.msra.mxu0 0
        %586 = vmatprep.mubr.bf16.mxu0 0
        %587 = vmatmul.mubr.bf16.gmra.mrb[0].mxu0 %v489
        %v588 = vpop.f32.mrb[0].mxu0
        %v589 = vadd.f32 %v540, %v588
        %v590 = vpop.f32.mrb[0].mxu0
        %v591 = vpop.f32.mrb[0].mxu0
        %v592 = vpop.f32.mrb[0].mxu0
        %593 = vdwg.mxu0
        %v594 = vpack.c.bf16 %v526, %v526
        %vm595 = vcmask 60416
        %596 = vst.msk [vmem:[%s423] sm:$0xf] %vm595, %v594
        %v597 = vpack.c.bf16 %v589, %v589
        %598 = vst.msk [vmem:[%s430] sm:$0xf] %vm595, %v597
        %v600 = vunpack.c.l.b16 %v594
        %v601 = vpack.c.b16 %v600, %v600
        %602 = vrot.lane.b32.xlu0 %v601, 120
        %v603 = vpop.permute.xlu0 %602
        %s605 = scalar_lea.vmem %s423, 4 [#allocation14]
        %606 = vst.msk [vmem:[%s605] sm:$0xf] %vm595, %v603
        %v608 = vunpack.c.l.b16 %v597
        %v609 = vpack.c.b16 %v608, %v608
        %610 = vrot.lane.b32.xlu0 %v609, 120
        %v611 = vpop.permute.xlu0 %610
        %s613 = scalar_lea.vmem %s430, 4 [#allocation15]
        %614 = vst.msk [vmem:[%s613] sm:$0xf] %vm595, %v611
        %615 = vrot.lane.b32.xlu0 %v601, 112
        %v616 = vpop.permute.xlu0 %615
        %s618 = scalar_lea.vmem %s423, 8 [#allocation14]
        %619 = vst.msk [vmem:[%s618] sm:$0xf] %vm595, %v616
        %620 = vrot.lane.b32.xlu0 %v609, 112
        %v621 = vpop.permute.xlu0 %620
        %s623 = scalar_lea.vmem %s430, 8 [#allocation15]
        %624 = vst.msk [vmem:[%s623] sm:$0xf] %vm595, %v621
        %625 = vrot.lane.b32.xlu0 %v601, 104
        %v626 = vpop.permute.xlu0 %625
        %s628 = scalar_lea.vmem %s423, 12 [#allocation14]
        %629 = vst.msk [vmem:[%s628] sm:$0xf] %vm595, %v626
        %630 = vrot.lane.b32.xlu0 %v609, 104
        %v631 = vpop.permute.xlu0 %630
        %s633 = scalar_lea.vmem %s430, 12 [#allocation15]
        %634 = vst.msk [vmem:[%s633] sm:$0xf] %vm595, %v631
        %s635 = sand.u32 %s208, 1
        %s636 = scalar_lea.sflag [#allocation4], %s635
        %s637 = sand.u32 %s208, 1
        %s638 = smul.addr %s637, 16
        %s639 = scalar_lea.vmem [#allocation14], %s638
        %s640 = sand.u32 %s236, 1
        %s641 = scalar_lea.sflag [#allocation16], %s640
        %s642 = sand.u32 %s236, 1
        %s643 = smul.addr %s642, 16
        %s644 = scalar_lea.vmem [#allocation15], %s643
        // Predicated region
        $region77: #{tpu_custom_call.1} parent=47 // pred_check
          %p645 = pneg %p218
        $region78: #{tpu_custom_call.1} parent=47 // pred_check_branch
          %647 = sbr.rel (%p645) target = $region80
        $region79: #{tpu_custom_call.1} parent=47 // pred_region
          %s649 = ssub.s32 256, 256
          %650 = vsyncadd %s636, %s649
          %s651 = smul.addr %s36, 8
          %s652 = sadd.s32 %s37, %s651
          %s653 = smul.addr %s652, 64
          %s654 = scalar_lea.hbm %s7, %s653
          %s655 = sshll.u32 %s639, 4
          %s656 = int_to_ptr.vmem [resolvable:$true] %s655
          %661 = dma.vmem_to_hbm [thread:$0]  %s656, 256, %s654, %s636, 64, 128, 4
        $region80: #{tpu_custom_call.1} parent=47 // pred_fallthru
          _
        // Predicated region
        $region81: #{tpu_custom_call.1} parent=47 // pred_check
          %p662 = pneg %p246
        $region82: #{tpu_custom_call.1} parent=47 // pred_check_branch
          %664 = sbr.rel (%p662) target = $region84
        $region83: #{tpu_custom_call.1} parent=47 // pred_region
          %s666 = ssub.s32 256, 256
          %667 = vsyncadd %s641, %s666
          %s668 = smul.addr %s36, 8
          %s669 = sadd.s32 %s37, %s668
          %s670 = smul.addr %s669, 64
          %s671 = scalar_lea.hbm %s8, %s670
          %s672 = sshll.u32 %s644, 4
          %s673 = int_to_ptr.vmem [resolvable:$true] %s672
          %678 = dma.vmem_to_hbm [thread:$0]  %s673, 256, %s671, %s641, 64, 128, 4
        $region84: #{tpu_custom_call.1} parent=47 // pred_fallthru
          _
      $region48: #{tpu_custom_call.1} parent=5 // pred_fallthru
        _
      %p679 = scmp.le.s32.totalorder 2, %s27
      // Predicated region
      $region85: #{tpu_custom_call.1} parent=5 // pred_check
        %p680 = pneg %p679
      $region86: #{tpu_custom_call.1} parent=5 // pred_check_branch
        %682 = sbr.rel (%p680) target = $region88
      $region87: #{tpu_custom_call.1} parent=5 // pred_region
        %s683 = ssub.s32 %s27, 2
        // Predicated region
        $region89: #{tpu_custom_call.1} parent=87 // pred_check
          %p684 = pneg %p224
        $region90: #{tpu_custom_call.1} parent=87 // pred_check_branch
          %686 = sbr.rel (%p684) target = $region92
        $region91: #{tpu_custom_call.1} parent=87 // pred_region
          %s687 = sand.u32 %s209, 1
          %s688 = scalar_lea.sflag [#allocation4], %s687
          %s689 = sand.u32 %s209, 1
          %s690 = smul.addr %s689, 16
          %s691 = scalar_lea.vmem [#allocation14], %s690
          %692 = dma.done %s688, 256
        $region92: #{tpu_custom_call.1} parent=87 // pred_fallthru
          _
        // Predicated region
        $region93: #{tpu_custom_call.1} parent=87 // pred_check
          %p693 = pneg %p252
        $region94: #{tpu_custom_call.1} parent=87 // pred_check_branch
          %695 = sbr.rel (%p693) target = $region96
        $region95: #{tpu_custom_call.1} parent=87 // pred_region
          %s696 = sand.u32 %s237, 1
          %s697 = scalar_lea.sflag [#allocation16], %s696
          %s698 = sand.u32 %s237, 1
          %s699 = smul.addr %s698, 16
          %s700 = scalar_lea.vmem [#allocation15], %s699
          %701 = dma.done %s697, 256
        $region96: #{tpu_custom_call.1} parent=87 // pred_fallthru
          _
      $region88: #{tpu_custom_call.1} parent=5 // pred_fallthru
        _
    $region6: #{tpu_custom_call.1} parent=1 // loop_footer
      %s31 = sadd.s32 1, %s27
    $region7: #{tpu_custom_call.1} parent=1 // loop_footer_branch
      %26 = sbr.rel target = $region3
    $region8: #{tpu_custom_call.1} parent=1 // loop_exit
      _
    %702 = vsyncpa [#allocation3], 1
    %s703 = scalar_lea.sflag [#allocation3], 1
    %704 = vsyncpa %s703, 1
    %705 = vsyncpa [#allocation6], 1
    %706 = vsyncpa [#allocation9], 1
    %707 = vsyncpa [#allocation12], 1
    %708 = vsyncpa [#allocation4], 1
    %s709 = scalar_lea.sflag [#allocation4], 1
    %710 = vsyncpa %s709, 1
    %711 = vsyncpa [#allocation16], 1
    %s712 = scalar_lea.sflag [#allocation16], 1
    %713 = vsyncpa %s712, 1

</llo_original>
